<compile_context>
chip_gen: v7x
topology: tpu7x:2x2x1
jax: 0.10.0
libtpu: 0.0.40
codegen_flags: <defaults>
</compile_context>

<pallas_src>
import jax
import jax.numpy as jnp
from jax.experimental import pallas as pl
from jax.experimental.pallas import tpu as pltpu


# ----------------------------------------------------------------------------
# Kernels
# ----------------------------------------------------------------------------

def _oracle_kernel_lane_dense(x_ref, o_ref):
    """x_ref: (TB, 2L); o_ref: (1, TB) lane-dense."""
    two_l = x_ref.shape[-1]
    L = two_l // 2
    a = x_ref[:, :L].astype(jnp.float32)
    b = x_ref[:, L:two_l].astype(jnp.float32)
    s = jnp.sum(jnp.abs(a - b), axis=1, keepdims=True)      # (TB, 1)
    res = (s <= 0.01).astype(jnp.float32)                    # (TB, 1)
    # (TB, 1) -> (1, TB): sublane->lane relayout (XLU has tons of slack here).
    # Lane-dense output block => dense vst + contiguous HBM writeback, and the
    # VMEM output buffers shrink from TB*512 B (lane-padded) to TB*4 B.
    o_ref[...] = jnp.transpose(res)


def _oracle_kernel_sublane(x_ref, o_ref):
    """Fallback layout. x_ref: (TB, 2L); o_ref: (TB, 1)."""
    two_l = x_ref.shape[-1]
    L = two_l // 2
    a = x_ref[:, :L].astype(jnp.float32)
    b = x_ref[:, L:two_l].astype(jnp.float32)
    s = jnp.sum(jnp.abs(a - b), axis=1, keepdims=True)
    o_ref[...] = (s <= 0.01).astype(jnp.float32)


# ----------------------------------------------------------------------------
# Generation-aware tile / VMEM budgeting
# ----------------------------------------------------------------------------

# (target input bytes per grid step, scoped-VMEM limit we allow ourselves)
_GEN_CFG = {
    "v7x": (14 << 20, 48 << 20),   # 64 MiB physical per TC -> leave headroom
    "v6e": (10 << 20, 64 << 20),   # 128 MiB physical
    "v5p": (8 << 20, 64 << 20),
    "v5e": (4 << 20, 48 << 20),    # slower HBM: bigger tiles buy little
    "unknown": (4 << 20, 32 << 20),
}


def _tpu_generation():
    try:
        kind = jax.devices()[0].device_kind.lower()
    except Exception:  # pragma: no cover - no devices / non-TPU backend
        return "unknown"
    if "v7" in kind or "7x" in kind:
        return "v7x"
    if "v6" in kind:
        return "v6e"
    if "v5" in kind and ("lite" in kind or "v5e" in kind):
        return "v5e"
    if "v5" in kind:
        return "v5p"
    return "unknown"


def _legalize_tb(B, tb, min_rows):
    """Round a candidate batch tile to a shape Mosaic lowers well:
    either the full batch, or a multiple of 128 (lane-dense output legal),
    or at least a multiple of min_rows (>= 8) for the sublane-output layout."""
    tb = max(1, min(int(tb), B))
    if tb >= B:
        return B
    if tb >= 128:
        return (tb // 128) * 128
    if tb >= min_rows:
        return (tb // min_rows) * min_rows
    return min(B, min_rows)


def _choose_batch_tile(B, F, itemsize, target_bytes, cap_bytes, requested=None):
    row_bytes = max(1, F * itemsize)
    min_rows = max(8, 32 // max(1, itemsize))  # sublane packing for narrow dtypes
    # Hard ceiling from the scoped-VMEM budget (2x double-buffered input tiles
    # + output buffers + headroom must stay under cap_bytes).
    budget_rows = max(min_rows, (cap_bytes - (6 << 20)) // (2 * row_bytes))
    # TODO(synk): add a feature-axis reduction grid (accumulator + pl.when
    # init/finalize) for extreme F where even min_rows rows exceed the budget.
    if requested is not None:
        tb = min(int(requested), budget_rows)
    else:
        tb = min(target_bytes // row_bytes, budget_rows)
        # When tiles get big, keep >= ~4 grid steps so v7x's two TensorCores
        # both get work and double-buffering has something to overlap — but
        # only if each step still moves >= ~1 MiB (else step overhead wins).
        quarter = ((B // 4) // 128) * 128
        if quarter >= 128 and quarter * row_bytes >= (1 << 20):
            tb = min(tb, quarter)
    return _legalize_tb(B, tb, min_rows)


# ----------------------------------------------------------------------------
# Wrapper
# ----------------------------------------------------------------------------

def oracle_neighborhood_net(x, *, block_batch=None, lane_dense_output=True):
    """x: (B, 2L) float -> (B,) float32, matching OracleNeighborhoodNet.forward."""
    x = jnp.asarray(x)
    if x.ndim != 2:
        raise ValueError("expected a 2-D input of shape (batch, 2*L)")
    B, F = x.shape
    if F % 2 != 0:
        raise ValueError("feature dim must be even (pairs of observations)")
    if B == 0:
        return jnp.zeros((0,), jnp.float32)
    if F == 0:
        return jnp.ones((B,), jnp.float32)  # empty sum (= 0) <= 0.01

    itemsize = int(jnp.dtype(x.dtype).itemsize)
    target_bytes, cap_bytes = _GEN_CFG[_tpu_generation()]
    TB = _choose_batch_tile(B, F, itemsize, target_bytes, cap_bytes,
                            requested=block_batch)
    num_blocks = pl.cdiv(B, TB)
    grid = (num_blocks,)

    # One fused, fully contiguous HBM read per step (preferred over two
    # row-strided half-block DMAs even when L % 128 == 0).
    in_spec = pl.BlockSpec((TB, F), lambda i: (i, 0))
    in_bytes = TB * F * itemsize

    def _cparams(out_buf_bytes):
        need = 2 * in_bytes + 2 * out_buf_bytes + (2 << 20)
        vmem_limit = int(min(max(need, 16 << 20), cap_bytes))
        return pltpu.CompilerParams(
            dimension_semantics=("parallel",),
            vmem_limit_bytes=vmem_limit,
        )

    lane_dense = lane_dense_output and (TB == B or TB % 128 == 0)

    if lane_dense:
        try:
            out = pl.pallas_call(
                _oracle_kernel_lane_dense,
                out_shape=jax.ShapeDtypeStruct((1, num_blocks * TB), jnp.float32),
                grid=grid,
                in_specs=[in_spec],
                out_specs=pl.BlockSpec((1, TB), lambda i: (0, i)),
                compiler_params=_cparams(max(4096, TB * 4)),
            )(x)
            # Ragged last tile: OOB input rows are read as padding and their
            # results land past index B in the flat output; drop them here.
            return out.reshape(-1)[:B]
        except Exception:
            # Safety net (eager-mode only): if the (TB,1)->(1,TB) relayout
            # fails to lower on this toolchain, fall back to the previously
            # validated sublane-oriented output layout below.
            pass

    out = pl.pallas_call(
        _oracle_kernel_sublane,
        out_shape=jax.ShapeDtypeStruct((B, 1), jnp.float32),
        grid=grid,
        in_specs=[in_spec],
        out_specs=pl.BlockSpec((TB, 1), lambda i: (i, 0)),
        compiler_params=_cparams(TB * 128 * 4),  # account for lane padding
    )(x)
    return out[:, 0]


# ----------------------------------------------------------------------------
# Reference + self-test
# ----------------------------------------------------------------------------

def _reference(x):
    L = x.shape[-1] // 2
    return (jnp.abs(x[:, :L] - x[:, L:]).sum(axis=1) <= 0.01).astype(jnp.float32)


if __name__ == "__main__":
    key = jax.random.PRNGKey(0)

    def make_case(k, B, L):
        k1, k2 = jax.random.split(k)
        left = jax.random.normal(k1, (B, L), dtype=jnp.float32)
        noise = jax.random.uniform(k2, (B, L), dtype=jnp.float32) * 1e-6
        right = left + noise                 # first half of rows: clear "neighbors"
        right = right.at[B // 2:].add(1.0)   # second half: clearly different
        return jnp.concatenate([left, right], axis=1)  # (B, 2L)

    keys = jax.random.split(key, 4)
    cases = [
        # (x, block_batch, lane_dense_output)
        (make_case(keys[0], 384, 128), 128, True),   # tiled grid, lane-aligned halves, lane-dense out
        (make_case(keys[1], 200, 37), 128, True),    # ragged last tile + misaligned in-kernel slice
        (make_case(keys[2], 64, 48), None, True),    # single block (TB == B)
        (make_case(keys[3], 96, 64), 32, False),     # sublane-output fallback layout
    ]

    for x, bb, ld in cases:
        y = jax.block_until_ready(
            oracle_neighborhood_net(x, block_batch=bb, lane_dense_output=ld))
        y_ref = _reference(x)
        assert y.shape == (x.shape[0],), (y.shape, x.shape)
        assert bool(jnp.all(y == y_ref)), (y, y_ref)

    print("KERNEL_OK")
</pallas_src>

<mosaic_0001>
module attributes {stable_mosaic.version = 11 : i64} {
  func.func @_oracle_kernel_lane_dense(%arg0: i32, %arg1: memref<128x256xf32, #tpu.memory_space<vmem>>, %arg2: memref<1x128xf32, #tpu.memory_space<vmem>>) attributes {dimension_semantics = [#tpu.dimension_semantics<parallel>], iteration_bounds = array<i64: 3>, scalar_prefetch = 0 : i64, scratch_operands = 0 : i64, tpu.core_type = #tpu.core_type<tc>, window_params = [{transform_indices = @transform_0, window_bounds = array<i64: 128, 256>}, {transform_indices = @transform_1, window_bounds = array<i64: 1, 128>}]} {
    %c0 = arith.constant 0 : index
    %c0_0 = arith.constant 0 : index
    %0 = vector.load %arg1[%c0, %c0_0] : memref<128x256xf32, #tpu.memory_space<vmem>>, vector<128x128xf32>
    %c0_1 = arith.constant 0 : index
    %c128 = arith.constant 128 : index
    %1 = vector.load %arg1[%c0_1, %c128] : memref<128x256xf32, #tpu.memory_space<vmem>>, vector<128x128xf32>
    %2 = arith.subf %0, %1 : vector<128x128xf32>
    %3 = math.absf %2 : vector<128x128xf32>
    %cst = arith.constant dense<0.000000e+00> : vector<128xf32>
    %4 = vector.multi_reduction <add>, %3, %cst [1] : vector<128x128xf32> to vector<128xf32>
    %5 = vector.shape_cast %4 : vector<128xf32> to vector<128x1xf32>
    %cst_2 = arith.constant 0.00999999977 : f32
    %6 = vector.broadcast %cst_2 : f32 to vector<128x1xf32>
    %7 = arith.cmpf ole, %5, %6 : vector<128x1xf32>
    %8 = arith.extui %7 : vector<128x1xi1> to vector<128x1xi32>
    %9 = arith.sitofp %8 : vector<128x1xi32> to vector<128x1xf32>
    %10 = tpu.transpose %9, [1, 0] : vector<128x1xf32> -> vector<1x128xf32>
    %c0_3 = arith.constant 0 : index
    %c0_4 = arith.constant 0 : index
    %11 = vector.load %arg2[%c0_3, %c0_4] : memref<1x128xf32, #tpu.memory_space<vmem>>, vector<1x128xf32>
    tpu.vector_store %arg2[%c0_3, %c0_4], %10 {strides = array<i32>} : memref<1x128xf32, #tpu.memory_space<vmem>>, vector<1x128xf32>,
    return
  }
  func.func @transform_0(%arg0: i32) -> (i32, i32) {
    %c0_i32 = arith.constant 0 : i32
    %c0_i32_0 = arith.constant 0 : i32
    return %arg0, %c0_i32 : i32, i32
  }
  func.func @transform_1(%arg0: i32) -> (i32, i32) {
    %c0_i32 = arith.constant 0 : i32
    %c0_i32_0 = arith.constant 0 : i32
    return %c0_i32, %arg0 : i32, i32
  }
}

module attributes {stable_mosaic.version = 11 : i64} {
  func.func @_oracle_kernel_sublane(%arg0: i32, %arg1: memref<128x256xf32, #tpu.memory_space<vmem>>, %arg2: memref<128x1xf32, #tpu.memory_space<vmem>>) attributes {dimension_semantics = [#tpu.dimension_semantics<parallel>], iteration_bounds = array<i64: 3>, scalar_prefetch = 0 : i64, scratch_operands = 0 : i64, tpu.core_type = #tpu.core_type<tc>, window_params = [{transform_indices = @transform_0, window_bounds = array<i64: 128, 256>}, {transform_indices = @transform_1, window_bounds = array<i64: 128, 1>}]} {
    %c0 = arith.constant 0 : index
    %c0_0 = arith.constant 0 : index
    %0 = vector.load %arg1[%c0, %c0_0] : memref<128x256xf32, #tpu.memory_space<vmem>>, vector<128x128xf32>
    %c0_1 = arith.constant 0 : index
    %c128 = arith.constant 128 : index
    %1 = vector.load %arg1[%c0_1, %c128] : memref<128x256xf32, #tpu.memory_space<vmem>>, vector<128x128xf32>
    %2 = arith.subf %0, %1 : vector<128x128xf32>
    %3 = math.absf %2 : vector<128x128xf32>
    %cst = arith.constant dense<0.000000e+00> : vector<128xf32>
    %4 = vector.multi_reduction <add>, %3, %cst [1] : vector<128x128xf32> to vector<128xf32>
    %5 = vector.shape_cast %4 : vector<128xf32> to vector<128x1xf32>
    %cst_2 = arith.constant 0.00999999977 : f32
    %6 = vector.broadcast %cst_2 : f32 to vector<128x1xf32>
    %7 = arith.cmpf ole, %5, %6 : vector<128x1xf32>
    %8 = arith.extui %7 : vector<128x1xi1> to vector<128x1xi32>
    %9 = arith.sitofp %8 : vector<128x1xi32> to vector<128x1xf32>
    %c0_3 = arith.constant 0 : index
    %c0_4 = arith.constant 0 : index
    %10 = vector.load %arg2[%c0_3, %c0_4] : memref<128x1xf32, #tpu.memory_space<vmem>>, vector<128x1xf32>
    tpu.vector_store %arg2[%c0_3, %c0_4], %9 {strides = array<i32>} : memref<128x1xf32, #tpu.memory_space<vmem>>, vector<128x1xf32>,
    return
  }
  func.func @transform_0(%arg0: i32) -> (i32, i32) {
    %c0_i32 = arith.constant 0 : i32
    %c0_i32_0 = arith.constant 0 : i32
    return %arg0, %c0_i32 : i32, i32
  }
  func.func @transform_1(%arg0: i32) -> (i32, i32) {
    %c0_i32 = arith.constant 0 : i32
    %c0_i32_0 = arith.constant 0 : i32
    return %arg0, %c0_i32 : i32, i32
  }
}

</mosaic_0001>

<llo_original>
// kernel: tpu_custom_call.1
$region0: #{tpu_custom_call.1}
  #allocation0 [shape = 'u32[]', space=smem, size = 0x4, offset = 0x4, fixed_abs, tag = 'smem constant byte address 0x4 - core index']
  #allocation1 [shape = 'u32[144,128]{1,0:T(1,128)}', space=vmem, size = 0x12000, scoped, tag = 'internal scratch']
  %s0 = inlined_call_operand.hbm [shape: f32[384,256], index: 0, kind: input, shape index: {}]
  %s1 = inlined_call_operand.hbm [shape: f32[1,384], index: 1, kind: output, shape index: {}]
  %s2 = sld [smem:[#allocation0]]
  $region41: #{tpu_custom_call.1} parent=0
    _
  %s4 = ssub.s32 1, %s2
  %s5 = scalar_select 0, %s4, %s2
  $region1: #{tpu_custom_call.1} parent=0
    #allocation2 [shape = 'u8[262144]{0}', space=vmem, size = 0x40000, scoped, tag = 'input window, operand 0']
    #allocation3 [shape = 's32[2]{0}', space=sflag, size = 0x8, scoped, tag = 'scoped memory for tpu_custom_call.1']
    #allocation4 [shape = 's32[2]{0}', space=sflag, size = 0x8, scoped, tag = 'scoped memory for tpu_custom_call.1']
    #allocation5 [shape = 'u8[1024]{0}', space=vmem, size = 0x400, scoped, tag = 'output window, operand 0']
    %6 = vsyncpa [#allocation3], 0
    %s7 = scalar_lea.sflag [#allocation3], 1
    %8 = vsyncpa %s7, 0
    %9 = vsyncpa [#allocation4], 0
    %s10 = scalar_lea.sflag [#allocation4], 1
    %11 = vsyncpa %s10, 0
    loop: start=0, step=1, limit=5
    $region2: #{tpu_custom_call.1} parent=1 // loop_pre_header
      _
    $region3: #{tpu_custom_call.1} parent=1 // loop_header
      %s13 = sphi 0, %s17
      %p14 = scmp.ge.s32.totalorder %s13, 5
      %s23 = sphi 0, %s25
      %s26 = sphi 0, %s23
      %s27 = sphi 0, %s26
      %s43 = sphi 0, %s27
      %s49 = sphi 0, %s51
      %s52 = sphi 0, %s49
      %s53 = sphi 0, %s52
      %s69 = sphi 0, %s53
    $region4: #{tpu_custom_call.1} parent=1 // loop_header_branch
      %16 = sbr.rel (%p14) target = $region8
    $region5: #{tpu_custom_call.1} parent=1 // loop_body
      %s18 = ssub.s32 %s13, 1
      %s19 = ssub.s32 %s13, 2
      %s20 = sadd.s32 %s13, 1
      %s21 = ssub.s32 %s13, %s20
      %p22 = scmp.eq.s32.totalorder %s21, 0
      %s24 = sadd.s32 %s23, 1
      %s25 = scalar_select %p22, %s23, %s24
      %p28 = pneg %p22
      %p29 = scmp.eq.s32.totalorder %s13, 2
      %p30 = por %p28, %p29
      %p31 = scmp.ne.s32.totalorder %s23, %s26
      %p32 = scmp.eq.s32.totalorder %s13, 0
      %p33 = por %p31, %p32
      %p34 = scmp.ne.s32.totalorder %s23, %s26
      %p35 = scmp.eq.s32.totalorder %s18, 2
      %p36 = por %p34, %p35
      %p37 = scmp.ne.s32.totalorder %s26, %s27
      %p38 = scmp.eq.s32.totalorder %s18, 0
      %p39 = por %p37, %p38
      %p40 = scmp.ne.s32.totalorder %s26, %s27
      %p41 = scmp.eq.s32.totalorder %s19, 2
      %p42 = por %p40, %p41
      %p44 = scmp.ne.s32.totalorder %s27, %s43
      %p45 = scmp.eq.s32.totalorder %s19, 0
      %p46 = por %p44, %p45
      %s47 = ssub.s32 %s13, %s20
      %p48 = scmp.eq.s32.totalorder %s47, 0
      %s50 = sadd.s32 %s49, 1
      %s51 = scalar_select %p48, %s49, %s50
      %p54 = pneg %p48
      %p55 = scmp.eq.s32.totalorder %s13, 2
      %p56 = por %p54, %p55
      %p57 = scmp.ne.s32.totalorder %s49, %s52
      %p58 = scmp.eq.s32.totalorder %s13, 0
      %p59 = por %p57, %p58
      %p60 = scmp.ne.s32.totalorder %s49, %s52
      %p61 = scmp.eq.s32.totalorder %s18, 2
      %p62 = por %p60, %p61
      %p63 = scmp.ne.s32.totalorder %s52, %s53
      %p64 = scmp.eq.s32.totalorder %s18, 0
      %p65 = por %p63, %p64
      %p66 = scmp.ne.s32.totalorder %s52, %s53
      %p67 = scmp.eq.s32.totalorder %s19, 2
      %p68 = por %p66, %p67
      %p70 = scmp.ne.s32.totalorder %s53, %s69
      %p71 = scmp.eq.s32.totalorder %s19, 0
      %p72 = por %p70, %p71
      %p73 = scmp.le.s32.totalorder 1, %s13
      %p74 = scmp.lt.s32.totalorder %s13, 4
      %p75 = pnand %p73, %p74
      %p76 = pneg %p75
      // Predicated region
      $region9: #{tpu_custom_call.1} parent=5 // pred_check
        _
      $region10: #{tpu_custom_call.1} parent=5 // pred_check_branch
        %78 = sbr.rel (%p75) target = $region12
      $region11: #{tpu_custom_call.1} parent=5 // pred_region
        %s79 = ssub.s32 %s13, 1
      $region12: #{tpu_custom_call.1} parent=5 // pred_fallthru
        _
      %p80 = scmp.lt.s32.totalorder %s13, 3
      // Predicated region
      $region13: #{tpu_custom_call.1} parent=5 // pred_check
        %p81 = pneg %p80
      $region14: #{tpu_custom_call.1} parent=5 // pred_check_branch
        %83 = sbr.rel (%p81) target = $region16
      $region15: #{tpu_custom_call.1} parent=5 // pred_region
        // Predicated region
        $region17: #{tpu_custom_call.1} parent=15 // pred_check
          %p84 = pneg %p33
        $region18: #{tpu_custom_call.1} parent=15 // pred_check_branch
          %86 = sbr.rel (%p84) target = $region20
        $region19: #{tpu_custom_call.1} parent=15 // pred_region
          %s87 = sand.u32 %s23, 1
          %s88 = scalar_lea.sflag [#allocation3], %s87
          %s89 = sand.u32 %s23, 1
          %s90 = smul.addr %s89, 256
          %s91 = scalar_lea.vmem [#allocation2], %s90
          %s92 = smul.u32 16, %s13
          %s94 = ssub.s32 4096, 4096
          %95 = vsyncadd %s88, %s94
          %s96 = smul.addr %s92, 2
          %s97 = smul.addr %s96, 128
          %s98 = scalar_lea.hbm %s0, %s97
          %s99 = sshll.u32 %s91, 4
          %s100 = int_to_ptr.vmem [resolvable:$true] %s99
          %105 = dma.hbm_to_vmem [thread:$0]  %s98, 4096, %s100, %s88, 256, 256, 16
        $region20: #{tpu_custom_call.1} parent=15 // pred_fallthru
          _
      $region16: #{tpu_custom_call.1} parent=5 // pred_fallthru
        _
      %p106 = scmp.le.s32.totalorder 1, %s13
      %p107 = scmp.lt.s32.totalorder %s13, 4
      %p108 = pnand %p106, %p107
      %p109 = pneg %p108
      // Predicated region
      $region21: #{tpu_custom_call.1} parent=5 // pred_check
        _
      $region22: #{tpu_custom_call.1} parent=5 // pred_check_branch
        %111 = sbr.rel (%p108) target = $region24
      $region23: #{tpu_custom_call.1} parent=5 // pred_region
        %s112 = ssub.s32 %s13, 1
        %s113 = sand.u32 %s26, 1
        %s114 = scalar_lea.sflag [#allocation3], %s113
        %s115 = sand.u32 %s26, 1
        %s116 = smul.addr %s115, 256
        %s117 = scalar_lea.vmem [#allocation2], %s116
        // Predicated region
        $region25: #{tpu_custom_call.1} parent=23 // pred_check
          %p118 = pneg %p39
        $region26: #{tpu_custom_call.1} parent=23 // pred_check_branch
          %120 = sbr.rel (%p118) target = $region28
        $region27: #{tpu_custom_call.1} parent=23 // pred_region
          %121 = dma.done %s114, 4096
        $region28: #{tpu_custom_call.1} parent=23 // pred_fallthru
          _
        %s122 = sand.u32 %s26, 1
        %s123 = scalar_lea.sflag [#allocation3], %s122
        %s124 = sand.u32 %s26, 1
        %s125 = smul.addr %s124, 256
        %s126 = scalar_lea.vmem [#allocation2], %s125
        %p127 = pneg %p39
        %p128 = pneg %p36
        %p129 = pneg %p65
        %p130 = pneg %p62
        %s131 = sand.u32 %s52, 1
        %s132 = scalar_lea.sflag [#allocation4], %s131
        %s133 = sand.u32 %s52, 1
        %s134 = scalar_lea.vmem [#allocation5], %s133
        %s135 = smul.u32 16, %s18
        %v136 = vld [vmem:[%s117] sm:$0xff]
        %v137 = vld [vmem:[%s117 + $0x10] sm:$0xff]
        %v138 = vld [vmem:[%s117 + $0x20] sm:$0xff]
        %v139 = vld [vmem:[%s117 + $0x30] sm:$0xff]
        %v140 = vld [vmem:[%s117 + $0x40] sm:$0xff]
        %v141 = vld [vmem:[%s117 + $0x50] sm:$0xff]
        %v142 = vld [vmem:[%s117 + $0x60] sm:$0xff]
        %v143 = vld [vmem:[%s117 + $0x70] sm:$0xff]
        %v144 = vld [vmem:[%s117 + $0x80] sm:$0xff]
        %v145 = vld [vmem:[%s117 + $0x90] sm:$0xff]
        %v146 = vld [vmem:[%s117 + $0xa0] sm:$0xff]
        %v147 = vld [vmem:[%s117 + $0xb0] sm:$0xff]
        %v148 = vld [vmem:[%s117 + $0xc0] sm:$0xff]
        %v149 = vld [vmem:[%s117 + $0xd0] sm:$0xff]
        %v150 = vld [vmem:[%s117 + $0xe0] sm:$0xff]
        %v151 = vld [vmem:[%s117 + $0xf0] sm:$0xff]
        %v152 = vld [vmem:[%s117 + $0x8] sm:$0xff]
        %v153 = vld [vmem:[%s117 + $0x18] sm:$0xff]
        %v154 = vld [vmem:[%s117 + $0x28] sm:$0xff]
        %v155 = vld [vmem:[%s117 + $0x38] sm:$0xff]
        %v156 = vld [vmem:[%s117 + $0x48] sm:$0xff]
        %v157 = vld [vmem:[%s117 + $0x58] sm:$0xff]
        %v158 = vld [vmem:[%s117 + $0x68] sm:$0xff]
        %v159 = vld [vmem:[%s117 + $0x78] sm:$0xff]
        %v160 = vld [vmem:[%s117 + $0x88] sm:$0xff]
        %v161 = vld [vmem:[%s117 + $0x98] sm:$0xff]
        %v162 = vld [vmem:[%s117 + $0xa8] sm:$0xff]
        %v163 = vld [vmem:[%s117 + $0xb8] sm:$0xff]
        %v164 = vld [vmem:[%s117 + $0xc8] sm:$0xff]
        %v165 = vld [vmem:[%s117 + $0xd8] sm:$0xff]
        %v166 = vld [vmem:[%s117 + $0xe8] sm:$0xff]
        %v167 = vld [vmem:[%s117 + $0xf8] sm:$0xff]
        %v168 = vsub.f32 %v136, %v152
        %v169 = vsub.f32 %v137, %v153
        %v170 = vsub.f32 %v138, %v154
        %v171 = vsub.f32 %v139, %v155
        %v172 = vsub.f32 %v140, %v156
        %v173 = vsub.f32 %v141, %v157
        %v174 = vsub.f32 %v142, %v158
        %v175 = vsub.f32 %v143, %v159
        %v176 = vsub.f32 %v144, %v160
        %v177 = vsub.f32 %v145, %v161
        %v178 = vsub.f32 %v146, %v162
        %v179 = vsub.f32 %v147, %v163
        %v180 = vsub.f32 %v148, %v164
        %v181 = vsub.f32 %v149, %v165
        %v182 = vsub.f32 %v150, %v166
        %v183 = vsub.f32 %v151, %v167
        %v184 = vand.u32 2147483647, %v168
        %v185 = vand.u32 2147483647, %v169
        %v186 = vand.u32 2147483647, %v170
        %v187 = vand.u32 2147483647, %v171
        %v188 = vand.u32 2147483647, %v172
        %v189 = vand.u32 2147483647, %v173
        %v190 = vand.u32 2147483647, %v174
        %v191 = vand.u32 2147483647, %v175
        %v192 = vand.u32 2147483647, %v176
        %v193 = vand.u32 2147483647, %v177
        %v194 = vand.u32 2147483647, %v178
        %v195 = vand.u32 2147483647, %v179
        %v196 = vand.u32 2147483647, %v180
        %v197 = vand.u32 2147483647, %v181
        %v198 = vand.u32 2147483647, %v182
        %v199 = vand.u32 2147483647, %v183
        %200 = vadd.xlane.f32.xlu0 %v184
        %v201 = vpop.xlane.xlu0 %200
        %202 = vadd.xlane.f32.xlu0 %v185
        %v203 = vpop.xlane.xlu0 %202
        %204 = vadd.xlane.f32.xlu0 %v186
        %v205 = vpop.xlane.xlu0 %204
        %206 = vadd.xlane.f32.xlu0 %v187
        %v207 = vpop.xlane.xlu0 %206
        %208 = vadd.xlane.f32.xlu0 %v188
        %v209 = vpop.xlane.xlu0 %208
        %210 = vadd.xlane.f32.xlu0 %v189
        %v211 = vpop.xlane.xlu0 %210
        %212 = vadd.xlane.f32.xlu0 %v190
        %v213 = vpop.xlane.xlu0 %212
        %214 = vadd.xlane.f32.xlu0 %v191
        %v215 = vpop.xlane.xlu0 %214
        %216 = vadd.xlane.f32.xlu0 %v192
        %v217 = vpop.xlane.xlu0 %216
        %218 = vadd.xlane.f32.xlu0 %v193
        %v219 = vpop.xlane.xlu0 %218
        %220 = vadd.xlane.f32.xlu0 %v194
        %v221 = vpop.xlane.xlu0 %220
        %222 = vadd.xlane.f32.xlu0 %v195
        %v223 = vpop.xlane.xlu0 %222
        %224 = vadd.xlane.f32.xlu0 %v196
        %v225 = vpop.xlane.xlu0 %224
        %226 = vadd.xlane.f32.xlu0 %v197
        %v227 = vpop.xlane.xlu0 %226
        %228 = vadd.xlane.f32.xlu0 %v198
        %v229 = vpop.xlane.xlu0 %228
        %230 = vadd.xlane.f32.xlu0 %v199
        %v231 = vpop.xlane.xlu0 %230
        %vm232 = vcmp.le.f32.partialorder %v201, 0.01
        %vm233 = vcmp.le.f32.partialorder %v203, 0.01
        %vm234 = vcmp.le.f32.partialorder %v205, 0.01
        %vm235 = vcmp.le.f32.partialorder %v207, 0.01
        %vm236 = vcmp.le.f32.partialorder %v209, 0.01
        %vm237 = vcmp.le.f32.partialorder %v211, 0.01
        %vm238 = vcmp.le.f32.partialorder %v213, 0.01
        %vm239 = vcmp.le.f32.partialorder %v215, 0.01
        %vm240 = vcmp.le.f32.partialorder %v217, 0.01
        %vm241 = vcmp.le.f32.partialorder %v219, 0.01
        %vm242 = vcmp.le.f32.partialorder %v221, 0.01
        %vm243 = vcmp.le.f32.partialorder %v223, 0.01
        %vm244 = vcmp.le.f32.partialorder %v225, 0.01
        %vm245 = vcmp.le.f32.partialorder %v227, 0.01
        %vm246 = vcmp.le.f32.partialorder %v229, 0.01
        %vm247 = vcmp.le.f32.partialorder %v231, 0.01
        %v248 = vsel %vm232, 1, 0
        %v249 = vsel %vm233, 1, 0
        %v250 = vsel %vm234, 1, 0
        %v251 = vsel %vm235, 1, 0
        %v252 = vsel %vm236, 1, 0
        %v253 = vsel %vm237, 1, 0
        %v254 = vsel %vm238, 1, 0
        %v255 = vsel %vm239, 1, 0
        %v256 = vsel %vm240, 1, 0
        %v257 = vsel %vm241, 1, 0
        %v258 = vsel %vm242, 1, 0
        %v259 = vsel %vm243, 1, 0
        %v260 = vsel %vm244, 1, 0
        %v261 = vsel %vm245, 1, 0
        %v262 = vsel %vm246, 1, 0
        %v263 = vsel %vm247, 1, 0
        %v264 = vcvt.s32.f32 %v248
        %v265 = vcvt.s32.f32 %v249
        %v266 = vcvt.s32.f32 %v250
        %v267 = vcvt.s32.f32 %v251
        %v268 = vcvt.s32.f32 %v252
        %v269 = vcvt.s32.f32 %v253
        %v270 = vcvt.s32.f32 %v254
        %v271 = vcvt.s32.f32 %v255
        %v272 = vcvt.s32.f32 %v256
        %v273 = vcvt.s32.f32 %v257
        %v274 = vcvt.s32.f32 %v258
        %v275 = vcvt.s32.f32 %v259
        %v276 = vcvt.s32.f32 %v260
        %v277 = vcvt.s32.f32 %v261
        %v278 = vcvt.s32.f32 %v262
        %v279 = vcvt.s32.f32 %v263
        %280 = vxpose.xlu0.b32.start [1/16] %v264, 128
        %281 = vxpose.xlu0.b32.cont [2/16] %v265, 128
        %282 = vxpose.xlu0.b32.cont [3/16] %v266, 128
        %283 = vxpose.xlu0.b32.cont [4/16] %v267, 128
        %284 = vxpose.xlu0.b32.cont [5/16] %v268, 128
        %285 = vxpose.xlu0.b32.cont [6/16] %v269, 128
        %286 = vxpose.xlu0.b32.cont [7/16] %v270, 128
        %287 = vxpose.xlu0.b32.cont [8/16] %v271, 128
        %288 = vxpose.xlu0.b32.cont [9/16] %v272, 128
        %289 = vxpose.xlu0.b32.cont [10/16] %v273, 128
        %290 = vxpose.xlu0.b32.cont [11/16] %v274, 128
        %291 = vxpose.xlu0.b32.cont [12/16] %v275, 128
        %292 = vxpose.xlu0.b32.cont [13/16] %v276, 128
        %293 = vxpose.xlu0.b32.cont [14/16] %v277, 128
        %294 = vxpose.xlu0.b32.cont [15/16] %v278, 128
        %295 = vxpose.xlu0.b32.end [16/16] %v279, 128
        %v296 = vpop.trf.xlu0
        %v297 = vpop.trf.xlu0
        %v298 = vpop.trf.xlu0
        %v299 = vpop.trf.xlu0
        %v300 = vpop.trf.xlu0
        %v301 = vpop.trf.xlu0
        %v302 = vpop.trf.xlu0
        %v303 = vpop.trf.xlu0
        %v304 = vpop.trf.xlu0
        %v305 = vpop.trf.xlu0
        %v306 = vpop.trf.xlu0
        %v307 = vpop.trf.xlu0
        %v308 = vpop.trf.xlu0
        %v309 = vpop.trf.xlu0
        %v310 = vpop.trf.xlu0
        %v311 = vpop.trf.xlu0
        %312 = vst [vmem:[%s134] sm:$0x1] %v296
        %s313 = sand.u32 %s52, 1
        %s314 = scalar_lea.sflag [#allocation4], %s313
        %s315 = sand.u32 %s52, 1
        %s316 = scalar_lea.vmem [#allocation5], %s315
        // Predicated region
        $region29: #{tpu_custom_call.1} parent=23 // pred_check
          %p317 = pneg %p62
        $region30: #{tpu_custom_call.1} parent=23 // pred_check_branch
          %319 = sbr.rel (%p317) target = $region32
        $region31: #{tpu_custom_call.1} parent=23 // pred_region
          %s321 = ssub.s32 16, 16
          %322 = vsyncadd %s314, %s321
          %s323 = smul.addr %s18, 16
          %s324 = scalar_lea.hbm %s1, %s323
          %s326 = sshll.u32 %s316, 4
          %s327 = int_to_ptr.vmem [resolvable:$true] %s326
          %329 = dma.vmem_to_hbm [thread:$0]  %s327, 16, %s324, %s314
        $region32: #{tpu_custom_call.1} parent=23 // pred_fallthru
          _
      $region24: #{tpu_custom_call.1} parent=5 // pred_fallthru
        _
      %p330 = scmp.le.s32.totalorder 2, %s13
      // Predicated region
      $region33: #{tpu_custom_call.1} parent=5 // pred_check
        %p331 = pneg %p330
      $region34: #{tpu_custom_call.1} parent=5 // pred_check_branch
        %333 = sbr.rel (%p331) target = $region36
      $region35: #{tpu_custom_call.1} parent=5 // pred_region
        %s334 = ssub.s32 %s13, 2
        // Predicated region
        $region37: #{tpu_custom_call.1} parent=35 // pred_check
          %p335 = pneg %p68
        $region38: #{tpu_custom_call.1} parent=35 // pred_check_branch
          %337 = sbr.rel (%p335) target = $region40
        $region39: #{tpu_custom_call.1} parent=35 // pred_region
          %s338 = sand.u32 %s53, 1
          %s339 = scalar_lea.sflag [#allocation4], %s338
          %s340 = sand.u32 %s53, 1
          %s341 = scalar_lea.vmem [#allocation5], %s340
          %342 = dma.done %s339, 16
        $region40: #{tpu_custom_call.1} parent=35 // pred_fallthru
          _
      $region36: #{tpu_custom_call.1} parent=5 // pred_fallthru
        _
    $region6: #{tpu_custom_call.1} parent=1 // loop_footer
      %s17 = sadd.s32 1, %s13
    $region7: #{tpu_custom_call.1} parent=1 // loop_footer_branch
      %12 = sbr.rel target = $region3
    $region8: #{tpu_custom_call.1} parent=1 // loop_exit
      _
    %343 = vsyncpa [#allocation3], 1
    %s344 = scalar_lea.sflag [#allocation3], 1
    %345 = vsyncpa %s344, 1
    %346 = vsyncpa [#allocation4], 1
    %s347 = scalar_lea.sflag [#allocation4], 1
    %348 = vsyncpa %s347, 1

// kernel: tpu_custom_call.1
$region0: #{tpu_custom_call.1}
  #allocation0 [shape = 'u32[]', space=smem, size = 0x4, offset = 0x4, fixed_abs, tag = 'smem constant byte address 0x4 - core index']
  #allocation1 [shape = 'u32[144,128]{1,0:T(1,128)}', space=vmem, size = 0x12000, scoped, tag = 'internal scratch']
  %s0 = inlined_call_operand.hbm [shape: f32[384,256], index: 0, kind: input, shape index: {}]
  %s1 = inlined_call_operand.vmem [shape: f32[384,1], index: 1, kind: output, shape index: {}]
  %s2 = sld [smem:[#allocation0]]
  $region41: #{tpu_custom_call.1} parent=0
    _
  %s4 = ssub.s32 1, %s2
  %s5 = scalar_select 0, %s4, %s2
  $region1: #{tpu_custom_call.1} parent=0
    #allocation2 [shape = 'u8[262144]{0}', space=vmem, size = 0x40000, scoped, tag = 'input window, operand 0']
    #allocation3 [shape = 's32[2]{0}', space=sflag, size = 0x8, scoped, tag = 'scoped memory for tpu_custom_call.1']
    %6 = vsyncpa [#allocation3], 0
    %s7 = scalar_lea.sflag [#allocation3], 1
    %8 = vsyncpa %s7, 0
    loop: start=0, step=1, limit=5
    $region2: #{tpu_custom_call.1} parent=1 // loop_pre_header
      _
    $region3: #{tpu_custom_call.1} parent=1 // loop_header
      %s10 = sphi 0, %s14
      %p11 = scmp.ge.s32.totalorder %s10, 5
      %s20 = sphi 0, %s22
      %s23 = sphi 0, %s20
      %s24 = sphi 0, %s23
      %s40 = sphi 0, %s24
      %s46 = sphi 0, %s48
      %s49 = sphi 0, %s46
      %s50 = sphi 0, %s49
      %s66 = sphi 0, %s50
    $region4: #{tpu_custom_call.1} parent=1 // loop_header_branch
      %13 = sbr.rel (%p11) target = $region8
    $region5: #{tpu_custom_call.1} parent=1 // loop_body
      %s15 = ssub.s32 %s10, 1
      %s16 = ssub.s32 %s10, 2
      %s17 = sadd.s32 %s10, 1
      %s18 = ssub.s32 %s10, %s17
      %p19 = scmp.eq.s32.totalorder %s18, 0
      %s21 = sadd.s32 %s20, 1
      %s22 = scalar_select %p19, %s20, %s21
      %p25 = pneg %p19
      %p26 = scmp.eq.s32.totalorder %s10, 2
      %p27 = por %p25, %p26
      %p28 = scmp.ne.s32.totalorder %s20, %s23
      %p29 = scmp.eq.s32.totalorder %s10, 0
      %p30 = por %p28, %p29
      %p31 = scmp.ne.s32.totalorder %s20, %s23
      %p32 = scmp.eq.s32.totalorder %s15, 2
      %p33 = por %p31, %p32
      %p34 = scmp.ne.s32.totalorder %s23, %s24
      %p35 = scmp.eq.s32.totalorder %s15, 0
      %p36 = por %p34, %p35
      %p37 = scmp.ne.s32.totalorder %s23, %s24
      %p38 = scmp.eq.s32.totalorder %s16, 2
      %p39 = por %p37, %p38
      %p41 = scmp.ne.s32.totalorder %s24, %s40
      %p42 = scmp.eq.s32.totalorder %s16, 0
      %p43 = por %p41, %p42
      %s44 = ssub.s32 %s10, %s17
      %p45 = scmp.eq.s32.totalorder %s44, 0
      %s47 = sadd.s32 %s46, 1
      %s48 = scalar_select %p45, %s46, %s47
      %p51 = pneg %p45
      %p52 = scmp.eq.s32.totalorder %s10, 2
      %p53 = por %p51, %p52
      %p54 = scmp.ne.s32.totalorder %s46, %s49
      %p55 = scmp.eq.s32.totalorder %s10, 0
      %p56 = por %p54, %p55
      %p57 = scmp.ne.s32.totalorder %s46, %s49
      %p58 = scmp.eq.s32.totalorder %s15, 2
      %p59 = por %p57, %p58
      %p60 = scmp.ne.s32.totalorder %s49, %s50
      %p61 = scmp.eq.s32.totalorder %s15, 0
      %p62 = por %p60, %p61
      %p63 = scmp.ne.s32.totalorder %s49, %s50
      %p64 = scmp.eq.s32.totalorder %s16, 2
      %p65 = por %p63, %p64
      %p67 = scmp.ne.s32.totalorder %s50, %s66
      %p68 = scmp.eq.s32.totalorder %s16, 0
      %p69 = por %p67, %p68
      %p70 = scmp.le.s32.totalorder 1, %s10
      %p71 = scmp.lt.s32.totalorder %s10, 4
      %p72 = pnand %p70, %p71
      %p73 = pneg %p72
      // Predicated region
      $region9: #{tpu_custom_call.1} parent=5 // pred_check
        _
      $region10: #{tpu_custom_call.1} parent=5 // pred_check_branch
        %75 = sbr.rel (%p72) target = $region12
      $region11: #{tpu_custom_call.1} parent=5 // pred_region
        %s76 = ssub.s32 %s10, 1
      $region12: #{tpu_custom_call.1} parent=5 // pred_fallthru
        _
      %p77 = scmp.lt.s32.totalorder %s10, 3
      // Predicated region
      $region13: #{tpu_custom_call.1} parent=5 // pred_check
        %p78 = pneg %p77
      $region14: #{tpu_custom_call.1} parent=5 // pred_check_branch
        %80 = sbr.rel (%p78) target = $region16
      $region15: #{tpu_custom_call.1} parent=5 // pred_region
        // Predicated region
        $region17: #{tpu_custom_call.1} parent=15 // pred_check
          %p81 = pneg %p30
        $region18: #{tpu_custom_call.1} parent=15 // pred_check_branch
          %83 = sbr.rel (%p81) target = $region20
        $region19: #{tpu_custom_call.1} parent=15 // pred_region
          %s84 = sand.u32 %s20, 1
          %s85 = scalar_lea.sflag [#allocation3], %s84
          %s86 = sand.u32 %s20, 1
          %s87 = smul.addr %s86, 256
          %s88 = scalar_lea.vmem [#allocation2], %s87
          %s89 = smul.u32 16, %s10
          %s91 = ssub.s32 4096, 4096
          %92 = vsyncadd %s85, %s91
          %s93 = smul.addr %s89, 2
          %s94 = smul.addr %s93, 128
          %s95 = scalar_lea.hbm %s0, %s94
          %s96 = sshll.u32 %s88, 4
          %s97 = int_to_ptr.vmem [resolvable:$true] %s96
          %102 = dma.hbm_to_vmem [thread:$0]  %s95, 4096, %s97, %s85, 256, 256, 16
        $region20: #{tpu_custom_call.1} parent=15 // pred_fallthru
          _
      $region16: #{tpu_custom_call.1} parent=5 // pred_fallthru
        _
      %p103 = scmp.le.s32.totalorder 1, %s10
      %p104 = scmp.lt.s32.totalorder %s10, 4
      %p105 = pnand %p103, %p104
      %p106 = pneg %p105
      // Predicated region
      $region21: #{tpu_custom_call.1} parent=5 // pred_check
        _
      $region22: #{tpu_custom_call.1} parent=5 // pred_check_branch
        %108 = sbr.rel (%p105) target = $region24
      $region23: #{tpu_custom_call.1} parent=5 // pred_region
        %s109 = ssub.s32 %s10, 1
        %s110 = sand.u32 %s23, 1
        %s111 = scalar_lea.sflag [#allocation3], %s110
        %s112 = sand.u32 %s23, 1
        %s113 = smul.addr %s112, 256
        %s114 = scalar_lea.vmem [#allocation2], %s113
        // Predicated region
        $region25: #{tpu_custom_call.1} parent=23 // pred_check
          %p115 = pneg %p36
        $region26: #{tpu_custom_call.1} parent=23 // pred_check_branch
          %117 = sbr.rel (%p115) target = $region28
        $region27: #{tpu_custom_call.1} parent=23 // pred_region
          %118 = dma.done %s111, 4096
        $region28: #{tpu_custom_call.1} parent=23 // pred_fallthru
          _
        %s119 = sand.u32 %s23, 1
        %s120 = scalar_lea.sflag [#allocation3], %s119
        %s121 = sand.u32 %s23, 1
        %s122 = smul.addr %s121, 256
        %s123 = scalar_lea.vmem [#allocation2], %s122
        %p124 = pneg %p36
        %p125 = pneg %p33
        %p126 = pneg %p62
        %p127 = pneg %p59
        %s128 = smul.u32 16, %s15
        %p129 = scmp.lt.s32.totalorder %s128, 47
        %s130 = scalar_select %p129, %s128, 47
        %s131 = smul.addr %s130, 8
        %s132 = scalar_lea.vmem %s1, %s131
        %s133 = smul.u32 16, %s15
        %s134 = smul.u32 16, %s15
        %p135 = scmp.lt.s32.totalorder %s134, 47
        %s136 = scalar_select %p135, %s134, 47
        %s137 = smul.addr %s136, 8
        %s138 = scalar_lea.vmem %s1, %s137
        %s139 = smul.u32 16, %s15
        %v140 = vld [vmem:[%s114] sm:$0xff]
        %v141 = vld [vmem:[%s114 + $0x10] sm:$0xff]
        %v142 = vld [vmem:[%s114 + $0x20] sm:$0xff]
        %v143 = vld [vmem:[%s114 + $0x30] sm:$0xff]
        %v144 = vld [vmem:[%s114 + $0x40] sm:$0xff]
        %v145 = vld [vmem:[%s114 + $0x50] sm:$0xff]
        %v146 = vld [vmem:[%s114 + $0x60] sm:$0xff]
        %v147 = vld [vmem:[%s114 + $0x70] sm:$0xff]
        %v148 = vld [vmem:[%s114 + $0x80] sm:$0xff]
        %v149 = vld [vmem:[%s114 + $0x90] sm:$0xff]
        %v150 = vld [vmem:[%s114 + $0xa0] sm:$0xff]
        %v151 = vld [vmem:[%s114 + $0xb0] sm:$0xff]
        %v152 = vld [vmem:[%s114 + $0xc0] sm:$0xff]
        %v153 = vld [vmem:[%s114 + $0xd0] sm:$0xff]
        %v154 = vld [vmem:[%s114 + $0xe0] sm:$0xff]
        %v155 = vld [vmem:[%s114 + $0xf0] sm:$0xff]
        %v156 = vld [vmem:[%s114 + $0x8] sm:$0xff]
        %v157 = vld [vmem:[%s114 + $0x18] sm:$0xff]
        %v158 = vld [vmem:[%s114 + $0x28] sm:$0xff]
        %v159 = vld [vmem:[%s114 + $0x38] sm:$0xff]
        %v160 = vld [vmem:[%s114 + $0x48] sm:$0xff]
        %v161 = vld [vmem:[%s114 + $0x58] sm:$0xff]
        %v162 = vld [vmem:[%s114 + $0x68] sm:$0xff]
        %v163 = vld [vmem:[%s114 + $0x78] sm:$0xff]
        %v164 = vld [vmem:[%s114 + $0x88] sm:$0xff]
        %v165 = vld [vmem:[%s114 + $0x98] sm:$0xff]
        %v166 = vld [vmem:[%s114 + $0xa8] sm:$0xff]
        %v167 = vld [vmem:[%s114 + $0xb8] sm:$0xff]
        %v168 = vld [vmem:[%s114 + $0xc8] sm:$0xff]
        %v169 = vld [vmem:[%s114 + $0xd8] sm:$0xff]
        %v170 = vld [vmem:[%s114 + $0xe8] sm:$0xff]
        %v171 = vld [vmem:[%s114 + $0xf8] sm:$0xff]
        %v172 = vsub.f32 %v140, %v156
        %v173 = vsub.f32 %v141, %v157
        %v174 = vsub.f32 %v142, %v158
        %v175 = vsub.f32 %v143, %v159
        %v176 = vsub.f32 %v144, %v160
        %v177 = vsub.f32 %v145, %v161
        %v178 = vsub.f32 %v146, %v162
        %v179 = vsub.f32 %v147, %v163
        %v180 = vsub.f32 %v148, %v164
        %v181 = vsub.f32 %v149, %v165
        %v182 = vsub.f32 %v150, %v166
        %v183 = vsub.f32 %v151, %v167
        %v184 = vsub.f32 %v152, %v168
        %v185 = vsub.f32 %v153, %v169
        %v186 = vsub.f32 %v154, %v170
        %v187 = vsub.f32 %v155, %v171
        %v188 = vand.u32 2147483647, %v172
        %v189 = vand.u32 2147483647, %v173
        %v190 = vand.u32 2147483647, %v174
        %v191 = vand.u32 2147483647, %v175
        %v192 = vand.u32 2147483647, %v176
        %v193 = vand.u32 2147483647, %v177
        %v194 = vand.u32 2147483647, %v178
        %v195 = vand.u32 2147483647, %v179
        %v196 = vand.u32 2147483647, %v180
        %v197 = vand.u32 2147483647, %v181
        %v198 = vand.u32 2147483647, %v182
        %v199 = vand.u32 2147483647, %v183
        %v200 = vand.u32 2147483647, %v184
        %v201 = vand.u32 2147483647, %v185
        %v202 = vand.u32 2147483647, %v186
        %v203 = vand.u32 2147483647, %v187
        %204 = vadd.xlane.f32.xlu0 %v188
        %v205 = vpop.xlane.xlu0 %204
        %206 = vadd.xlane.f32.xlu0 %v189
        %v207 = vpop.xlane.xlu0 %206
        %208 = vadd.xlane.f32.xlu0 %v190
        %v209 = vpop.xlane.xlu0 %208
        %210 = vadd.xlane.f32.xlu0 %v191
        %v211 = vpop.xlane.xlu0 %210
        %212 = vadd.xlane.f32.xlu0 %v192
        %v213 = vpop.xlane.xlu0 %212
        %214 = vadd.xlane.f32.xlu0 %v193
        %v215 = vpop.xlane.xlu0 %214
        %216 = vadd.xlane.f32.xlu0 %v194
        %v217 = vpop.xlane.xlu0 %216
        %218 = vadd.xlane.f32.xlu0 %v195
        %v219 = vpop.xlane.xlu0 %218
        %220 = vadd.xlane.f32.xlu0 %v196
        %v221 = vpop.xlane.xlu0 %220
        %222 = vadd.xlane.f32.xlu0 %v197
        %v223 = vpop.xlane.xlu0 %222
        %224 = vadd.xlane.f32.xlu0 %v198
        %v225 = vpop.xlane.xlu0 %224
        %226 = vadd.xlane.f32.xlu0 %v199
        %v227 = vpop.xlane.xlu0 %226
        %228 = vadd.xlane.f32.xlu0 %v200
        %v229 = vpop.xlane.xlu0 %228
        %230 = vadd.xlane.f32.xlu0 %v201
        %v231 = vpop.xlane.xlu0 %230
        %232 = vadd.xlane.f32.xlu0 %v202
        %v233 = vpop.xlane.xlu0 %232
        %234 = vadd.xlane.f32.xlu0 %v203
        %v235 = vpop.xlane.xlu0 %234
        %vm236 = vcmp.le.f32.partialorder %v205, 0.01
        %vm237 = vcmp.le.f32.partialorder %v207, 0.01
        %vm238 = vcmp.le.f32.partialorder %v209, 0.01
        %vm239 = vcmp.le.f32.partialorder %v211, 0.01
        %vm240 = vcmp.le.f32.partialorder %v213, 0.01
        %vm241 = vcmp.le.f32.partialorder %v215, 0.01
        %vm242 = vcmp.le.f32.partialorder %v217, 0.01
        %vm243 = vcmp.le.f32.partialorder %v219, 0.01
        %vm244 = vcmp.le.f32.partialorder %v221, 0.01
        %vm245 = vcmp.le.f32.partialorder %v223, 0.01
        %vm246 = vcmp.le.f32.partialorder %v225, 0.01
        %vm247 = vcmp.le.f32.partialorder %v227, 0.01
        %vm248 = vcmp.le.f32.partialorder %v229, 0.01
        %vm249 = vcmp.le.f32.partialorder %v231, 0.01
        %vm250 = vcmp.le.f32.partialorder %v233, 0.01
        %vm251 = vcmp.le.f32.partialorder %v235, 0.01
        %v252 = vsel %vm236, 1, 0
        %v253 = vsel %vm237, 1, 0
        %v254 = vsel %vm238, 1, 0
        %v255 = vsel %vm239, 1, 0
        %v256 = vsel %vm240, 1, 0
        %v257 = vsel %vm241, 1, 0
        %v258 = vsel %vm242, 1, 0
        %v259 = vsel %vm243, 1, 0
        %v260 = vsel %vm244, 1, 0
        %v261 = vsel %vm245, 1, 0
        %v262 = vsel %vm246, 1, 0
        %v263 = vsel %vm247, 1, 0
        %v264 = vsel %vm248, 1, 0
        %v265 = vsel %vm249, 1, 0
        %v266 = vsel %vm250, 1, 0
        %v267 = vsel %vm251, 1, 0
        %v268 = vcvt.s32.f32 %v252
        %v269 = vcvt.s32.f32 %v253
        %v270 = vcvt.s32.f32 %v254
        %v271 = vcvt.s32.f32 %v255
        %v272 = vcvt.s32.f32 %v256
        %v273 = vcvt.s32.f32 %v257
        %v274 = vcvt.s32.f32 %v258
        %v275 = vcvt.s32.f32 %v259
        %v276 = vcvt.s32.f32 %v260
        %v277 = vcvt.s32.f32 %v261
        %v278 = vcvt.s32.f32 %v262
        %v279 = vcvt.s32.f32 %v263
        %v280 = vcvt.s32.f32 %v264
        %v281 = vcvt.s32.f32 %v265
        %v282 = vcvt.s32.f32 %v266
        %v283 = vcvt.s32.f32 %v267
        %vm284 = vcmask 7168
        %285 = vst.msk [vmem:[%s138] sm:$0xff] %vm284, %v268
        %286 = vst.msk [vmem:[%s138 + $0x8] sm:$0xff] %vm284, %v269
        %287 = vst.msk [vmem:[%s138 + $0x10] sm:$0xff] %vm284, %v270
        %288 = vst.msk [vmem:[%s138 + $0x18] sm:$0xff] %vm284, %v271
        %289 = vst.msk [vmem:[%s138 + $0x20] sm:$0xff] %vm284, %v272
        %290 = vst.msk [vmem:[%s138 + $0x28] sm:$0xff] %vm284, %v273
        %291 = vst.msk [vmem:[%s138 + $0x30] sm:$0xff] %vm284, %v274
        %292 = vst.msk [vmem:[%s138 + $0x38] sm:$0xff] %vm284, %v275
        %293 = vst.msk [vmem:[%s138 + $0x40] sm:$0xff] %vm284, %v276
        %294 = vst.msk [vmem:[%s138 + $0x48] sm:$0xff] %vm284, %v277
        %295 = vst.msk [vmem:[%s138 + $0x50] sm:$0xff] %vm284, %v278
        %296 = vst.msk [vmem:[%s138 + $0x58] sm:$0xff] %vm284, %v279
        %297 = vst.msk [vmem:[%s138 + $0x60] sm:$0xff] %vm284, %v280
        %298 = vst.msk [vmem:[%s138 + $0x68] sm:$0xff] %vm284, %v281
        %299 = vst.msk [vmem:[%s138 + $0x70] sm:$0xff] %vm284, %v282
        %300 = vst.msk [vmem:[%s138 + $0x78] sm:$0xff] %vm284, %v283
        %s301 = smul.u32 16, %s15
        %p302 = scmp.lt.s32.totalorder %s301, 47
        %s303 = scalar_select %p302, %s301, 47
        %s304 = smul.addr %s303, 8
        %s305 = scalar_lea.vmem %s1, %s304
        // Predicated region
        $region29: #{tpu_custom_call.1} parent=23 // pred_check
          %p306 = pneg %p59
        $region30: #{tpu_custom_call.1} parent=23 // pred_check_branch
          %308 = sbr.rel (%p306) target = $region32
        $region31: #{tpu_custom_call.1} parent=23 // pred_region
          %s309 = smul.u32 16, %s15
        $region32: #{tpu_custom_call.1} parent=23 // pred_fallthru
          _
      $region24: #{tpu_custom_call.1} parent=5 // pred_fallthru
        _
      %p310 = scmp.le.s32.totalorder 2, %s10
      // Predicated region
      $region33: #{tpu_custom_call.1} parent=5 // pred_check
        %p311 = pneg %p310
      $region34: #{tpu_custom_call.1} parent=5 // pred_check_branch
        %313 = sbr.rel (%p311) target = $region36
      $region35: #{tpu_custom_call.1} parent=5 // pred_region
        %s314 = ssub.s32 %s10, 2
        // Predicated region
        $region37: #{tpu_custom_call.1} parent=35 // pred_check
          %p315 = pneg %p65
        $region38: #{tpu_custom_call.1} parent=35 // pred_check_branch
          %317 = sbr.rel (%p315) target = $region40
        $region39: #{tpu_custom_call.1} parent=35 // pred_region
          %s318 = smul.u32 16, %s16
          %p319 = scmp.lt.s32.totalorder %s318, 47
          %s320 = scalar_select %p319, %s318, 47
          %s321 = smul.addr %s320, 8
          %s322 = scalar_lea.vmem %s1, %s321
        $region40: #{tpu_custom_call.1} parent=35 // pred_fallthru
          _
      $region36: #{tpu_custom_call.1} parent=5 // pred_fallthru
        _
    $region6: #{tpu_custom_call.1} parent=1 // loop_footer
      %s14 = sadd.s32 1, %s10
    $region7: #{tpu_custom_call.1} parent=1 // loop_footer_branch
      %9 = sbr.rel target = $region3
    $region8: #{tpu_custom_call.1} parent=1 // loop_exit
      _
    %323 = vsyncpa [#allocation3], 1
    %s324 = scalar_lea.sflag [#allocation3], 1
    %325 = vsyncpa %s324, 1

</llo_original>
